<compile_context>
chip_gen: v5e
topology: v5e:2x2
jax: 0.10.0
libtpu: 0.0.40
codegen_flags: <defaults>
</compile_context>

<pallas_src>
import functools

import jax
import jax.numpy as jnp
from jax.experimental import pallas as pl
from jax.experimental.pallas import tpu as pltpu


def actor_critic_kernel(x_ref, p_ref, out_ref, *, action_dim, state_dim, hid):
    f32 = jnp.float32
    S = state_dim
    x = x_ref[...].astype(f32)

    # Recover fused weights from the single packed parameter slab with static
    # slices (sublane offsets 0 / S / S+hid / S+2*hid are all multiples of 8).
    w1 = p_ref[0:S, 0:hid].astype(f32)                       # (S,   hid)  [w1a | w1c]
    w2 = p_ref[S:S + hid, 0:hid].astype(f32)                 # (hid, hid)  block-diag
    w3 = p_ref[S + hid:S + 2 * hid, :].astype(f32)           # (hid, out_w) block-diag
    bz = p_ref[S + 2 * hid:S + 2 * hid + 8, :].astype(f32)   # (8,   out_w) bias rows

    b1 = bz[0:1, 0:hid]   # fused layer-1 bias [b1a | b1c]
    b2 = bz[1:2, 0:hid]   # fused layer-2 bias [b2a | b2c]
    b3 = bz[2:3, :]       # fused layer-3 bias [b3a | b3c | 0...]

    # 3 MXU matmuls, f32 accumulation.
    h = jnp.tanh(jnp.dot(x, w1, preferred_element_type=f32) + b1)
    h = jnp.tanh(jnp.dot(h, w2, preferred_element_type=f32) + b2)
    z = jnp.dot(h, w3, preferred_element_type=f32) + b3      # (B, out_w)

    # Masked softmax over the first `action_dim` lanes only.
    col = jax.lax.broadcasted_iota(jnp.int32, z.shape, dimension=1)
    is_logit = col < action_dim
    masked = jnp.where(is_logit, z, jnp.float32(-1e30))
    m = jnp.max(masked, axis=-1, keepdims=True)
    e = jnp.where(is_logit, jnp.exp(masked - m), jnp.float32(0.0))
    denom = jnp.sum(e, axis=-1, keepdims=True)
    inv = pl.reciprocal(denom, approx=True)       # EUP slot
    inv = inv * (2.0 - denom * inv)               # one Newton step -> ~f32 exact
    probs = e * inv

    # Lane-dense result: [probs | value | zeros].
    out_ref[...] = jnp.where(is_logit, probs, z).astype(out_ref.dtype)


def init_params(key, state_dim, action_dim, hidden=64, dtype=jnp.float32):
    """Raw (unfused) parameters, nn.Linear-style fan-in uniform init."""
    keys = jax.random.split(key, 12)

    def linear(kw, kb, fan_in, fan_out):
        bound = 1.0 / jnp.sqrt(jnp.array(fan_in, dtype=jnp.float32))
        w = jax.random.uniform(kw, (fan_in, fan_out), dtype, -bound, bound)
        b = jax.random.uniform(kb, (1, fan_out), dtype, -bound, bound)
        return w, b

    w1a, b1a = linear(keys[0], keys[1], state_dim, hidden)
    w2a, b2a = linear(keys[2], keys[3], hidden, hidden)
    w3a, b3a = linear(keys[4], keys[5], hidden, action_dim)
    w1c, b1c = linear(keys[6], keys[7], state_dim, hidden)
    w2c, b2c = linear(keys[8], keys[9], hidden, hidden)
    w3c, b3c = linear(keys[10], keys[11], hidden, 1)
    return (w1a, b1a, w2a, b2a, w3a, b3a, w1c, b1c, w2c, b2c, w3c, b3c)


def pack_params(params, action_dim, weight_dtype=jnp.bfloat16):
    """Fuse actor+critic params into ONE (S + 2*hid + 8, 128) slab:
       rows [0:S)        : W1 = [w1a | w1c]
       rows [S:S+hid)    : W2 block-diagonal
       rows [S+hid:+hid) : W3 block-diagonal (actor lanes [0:A), critic lane A)
       rows [S+2*hid:+8) : bias rows b1 / b2 / b3 (rest zero-padded)."""
    (w1a, b1a, w2a, b2a, w3a, b3a, w1c, b1c, w2c, b2c, w3c, b3c) = params
    S = w1a.shape[0]
    ha, hc = w1a.shape[1], w1c.shape[1]
    hid = ha + hc                                            # fused hidden (128)
    out_w = max(128, ((action_dim + 1 + 127) // 128) * 128)  # lane-dense output
    pw = max(hid, out_w)
    f32 = jnp.float32

    P = jnp.zeros((S + 2 * hid + 8, pw), f32)
    # Layer 1: [w1a | w1c]
    P = P.at[0:S, 0:ha].set(w1a.astype(f32))
    P = P.at[0:S, ha:hid].set(w1c.astype(f32))
    # Layer 2: block-diagonal
    P = P.at[S:S + ha, 0:ha].set(w2a.astype(f32))
    P = P.at[S + ha:S + hid, ha:hid].set(w2c.astype(f32))
    # Layer 3: block-diagonal -> actor logits in lanes [0:A), value in lane A
    r3 = S + hid
    P = P.at[r3:r3 + ha, 0:action_dim].set(w3a.astype(f32))
    P = P.at[r3 + ha:r3 + hid, action_dim:action_dim + 1].set(w3c.astype(f32))
    # Bias rows
    rb = S + 2 * hid
    P = P.at[rb, 0:ha].set(b1a[0].astype(f32))
    P = P.at[rb, ha:hid].set(b1c[0].astype(f32))
    P = P.at[rb + 1, 0:ha].set(b2a[0].astype(f32))
    P = P.at[rb + 1, ha:hid].set(b2c[0].astype(f32))
    P = P.at[rb + 2, 0:action_dim].set(b3a[0].astype(f32))
    P = P.at[rb + 2, action_dim:action_dim + 1].set(b3c[0].astype(f32))

    meta = dict(state_dim=S, hid=hid, out_w=pw)
    return P.astype(weight_dtype), meta


def _pick_block_b(B):
    def round_up8(n):
        return ((n + 7) // 8) * 8
    if B <= 128:
        return B                                  # single step
    if B <= 512:
        return round_up8(-(-B // 2))              # >=2 steps -> both v7x TCs engage
    return min(1024, round_up8(-(-B // 2)))       # large tiles ~85%+ of HBM roofline


def actor_critic_forward(state, packed, meta, action_dim, out_dtype=jnp.float32):
    B, S = state.shape
    assert S == meta["state_dim"]
    hid, out_w = meta["hid"], meta["out_w"]

    block_b = _pick_block_b(B)
    grid = (pl.cdiv(B, block_b),)

    kernel = functools.partial(actor_critic_kernel, action_dim=action_dim,
                               state_dim=S, hid=hid)

    flops = 2 * B * (S * hid + hid * hid + hid * out_w)
    transcendentals = B * (2 * hid + out_w)               # 2x tanh + exp lanes
    bytes_accessed = (B * S * state.dtype.itemsize
                      + packed.size * packed.dtype.itemsize
                      + B * out_w * jnp.dtype(out_dtype).itemsize)

    out = pl.pallas_call(
        kernel,
        out_shape=jax.ShapeDtypeStruct((B, out_w), out_dtype),
        grid=grid,
        in_specs=[
            pl.BlockSpec((block_b, S), lambda i: (i, 0)),
            pl.BlockSpec(packed.shape, lambda i: (0, 0)),   # single param DMA
        ],
        out_specs=pl.BlockSpec((block_b, out_w), lambda i: (i, 0)),
        compiler_params=pltpu.CompilerParams(
            dimension_semantics=("parallel",),
            vmem_limit_bytes=64 << 20),
        cost_estimate=pl.CostEstimate(
            flops=flops, transcendentals=transcendentals,
            bytes_accessed=bytes_accessed),
    )(state, packed)

    probs = out[:, :action_dim]
    value = out[:, action_dim:action_dim + 1]
    return probs, value


def reference_forward(state, params):
    (w1a, b1a, w2a, b2a, w3a, b3a, w1c, b1c, w2c, b2c, w3c, b3c) = params
    h = jnp.tanh(state @ w1a + b1a)
    h = jnp.tanh(h @ w2a + b2a)
    probs = jax.nn.softmax(h @ w3a + b3a, axis=-1)
    c = jnp.tanh(state @ w1c + b1c)
    c = jnp.tanh(c @ w2c + b2c)
    value = c @ w3c + b3c
    return probs, value


def quantize_params(params, dtype):
    """Round params through `dtype` (used to build a bit-comparable reference)."""
    return tuple(p.astype(dtype).astype(jnp.float32) for p in params)


if __name__ == "__main__":
    key = jax.random.PRNGKey(0)
    k_state, k_params = jax.random.split(key)

    B, state_dim, action_dim = 8, 32, 6
    state = jax.random.normal(k_state, (B, state_dim), dtype=jnp.float32)
    params = init_params(k_params, state_dim, action_dim)

    # Pack ONCE; the bf16 slab stays device-resident across repeated rollout
    # calls, so only 2 input DMAs (state + params) happen per invocation.
    packed, meta = pack_params(params, action_dim, weight_dtype=jnp.bfloat16)

    probs, value = actor_critic_forward(state, packed, meta, action_dim)
    probs = jax.block_until_ready(probs)
    value = jax.block_until_ready(value)

    # Tight check against a reference built from the same bf16-rounded (but
    # UNFUSED) params: verifies the block-diagonal fusion / packed layout
    # without the bf16 quantization delta.
    q_params = quantize_params(params, jnp.bfloat16)
    probs_ref, value_ref = reference_forward(state, q_params)
    assert probs.shape == (B, action_dim)
    assert value.shape == (B, 1)
    assert jnp.allclose(probs, probs_ref, atol=2e-5, rtol=2e-5)
    assert jnp.allclose(value, value_ref, atol=2e-5, rtol=2e-5)
    assert jnp.allclose(jnp.sum(probs, axis=-1), 1.0, atol=1e-5)

    # Loose check against the raw f32 reference (bounds the bf16-weight error).
    probs_f32, value_f32 = reference_forward(state, params)
    assert jnp.allclose(probs, probs_f32, atol=5e-2, rtol=0)
    assert jnp.allclose(value, value_f32, atol=5e-2, rtol=0)

    print("KERNEL_OK")
</pallas_src>

<mosaic_0001>
module attributes {stable_mosaic.version = 11 : i64} {
  func.func @actor_critic_kernel(%arg0: i32, %arg1: memref<8x32xf32, #tpu.memory_space<vmem>>, %arg2: memref<296x128xbf16, #tpu.memory_space<vmem>>, %arg3: memref<8x128xf32, #tpu.memory_space<vmem>>) attributes {dimension_semantics = [#tpu.dimension_semantics<parallel>], iteration_bounds = array<i64: 1>, scalar_prefetch = 0 : i64, scratch_operands = 0 : i64, tpu.core_type = #tpu.core_type<tc>, window_params = [{transform_indices = @transform_0, window_bounds = array<i64: 8, 32>}, {pipeline_mode = #tpu.pipeline_mode<synchronous>, transform_indices = @transform_1, window_bounds = array<i64: 296, 128>}, {transform_indices = @transform_2, window_bounds = array<i64: 8, 128>}]} {
    %c0 = arith.constant 0 : index
    %c0_0 = arith.constant 0 : index
    %0 = vector.load %arg1[%c0, %c0_0] : memref<8x32xf32, #tpu.memory_space<vmem>>, vector<8x32xf32>
    %c0_1 = arith.constant 0 : index
    %c0_2 = arith.constant 0 : index
    %1 = vector.load %arg2[%c0_1, %c0_2] : memref<296x128xbf16, #tpu.memory_space<vmem>>, vector<32x128xbf16>
    %2 = arith.extf %1 : vector<32x128xbf16> to vector<32x128xf32>
    %c32 = arith.constant 32 : index
    %c0_3 = arith.constant 0 : index
    %3 = vector.load %arg2[%c32, %c0_3] : memref<296x128xbf16, #tpu.memory_space<vmem>>, vector<128x128xbf16>
    %4 = arith.extf %3 : vector<128x128xbf16> to vector<128x128xf32>
    %c160 = arith.constant 160 : index
    %c0_4 = arith.constant 0 : index
    %5 = vector.load %arg2[%c160, %c0_4] : memref<296x128xbf16, #tpu.memory_space<vmem>>, vector<128x128xbf16>
    %6 = arith.extf %5 : vector<128x128xbf16> to vector<128x128xf32>
    %c288 = arith.constant 288 : index
    %c0_5 = arith.constant 0 : index
    %7 = vector.load %arg2[%c288, %c0_5] : memref<296x128xbf16, #tpu.memory_space<vmem>>, vector<8x128xbf16>
    %8 = arith.extf %7 : vector<8x128xbf16> to vector<8x128xf32>
    %9 = vector.extract_strided_slice %8 {offsets = [0, 0], sizes = [1, 128], strides = [1, 1]} : vector<8x128xf32> to vector<1x128xf32>
    %10 = vector.extract_strided_slice %8 {offsets = [1, 0], sizes = [1, 128], strides = [1, 1]} : vector<8x128xf32> to vector<1x128xf32>
    %11 = vector.extract_strided_slice %8 {offsets = [2, 0], sizes = [1, 128], strides = [1, 1]} : vector<8x128xf32> to vector<1x128xf32>
    %cst = arith.constant dense<0.000000e+00> : vector<8x128xf32>
    %12 = tpu.matmul %0, %2, %cst {dimension_numbers = #tpu.dot_dimension_numbers<[1], [0], [0], [1], [0, 0, 1, 1], [], []>} : vector<8x32xf32>, vector<32x128xf32>, vector<8x128xf32> -> vector<8x128xf32>
    %13 = vector.broadcast %9 : vector<1x128xf32> to vector<8x128xf32>
    %14 = arith.addf %12, %13 : vector<8x128xf32>
    %15 = math.tanh %14 : vector<8x128xf32>
    %cst_6 = arith.constant dense<0.000000e+00> : vector<8x128xf32>
    %16 = tpu.matmul %15, %4, %cst_6 {dimension_numbers = #tpu.dot_dimension_numbers<[1], [0], [0], [1], [0, 0, 1, 1], [], []>} : vector<8x128xf32>, vector<128x128xf32>, vector<8x128xf32> -> vector<8x128xf32>
    %17 = vector.broadcast %10 : vector<1x128xf32> to vector<8x128xf32>
    %18 = arith.addf %16, %17 : vector<8x128xf32>
    %19 = math.tanh %18 : vector<8x128xf32>
    %cst_7 = arith.constant dense<0.000000e+00> : vector<8x128xf32>
    %20 = tpu.matmul %19, %6, %cst_7 {dimension_numbers = #tpu.dot_dimension_numbers<[1], [0], [0], [1], [0, 0, 1, 1], [], []>} : vector<8x128xf32>, vector<128x128xf32>, vector<8x128xf32> -> vector<8x128xf32>
    %21 = vector.broadcast %11 : vector<1x128xf32> to vector<8x128xf32>
    %22 = arith.addf %20, %21 : vector<8x128xf32>
    %23 = tpu.iota {dimensions = array<i32: 1>} : vector<8x128xi32>
    %c6_i32 = arith.constant 6 : i32
    %24 = vector.broadcast %c6_i32 : i32 to vector<8x128xi32>
    %25 = arith.cmpi slt, %23, %24 : vector<8x128xi32>
    %cst_8 = arith.constant -1.000000e+30 : f32
    %26 = vector.broadcast %cst_8 : f32 to vector<8x128xf32>
    %27 = arith.select %25, %22, %26 : vector<8x128xi1>, vector<8x128xf32>
    %cst_9 = arith.constant dense<0xFF800000> : vector<8xf32>
    %28 = vector.multi_reduction <maximumf>, %27, %cst_9 [1] : vector<8x128xf32> to vector<8xf32>
    %29 = vector.shape_cast %28 : vector<8xf32> to vector<8x1xf32>
    %30 = vector.broadcast %29 : vector<8x1xf32> to vector<8x128xf32>
    %31 = arith.subf %27, %30 : vector<8x128xf32>
    %32 = math.exp %31 : vector<8x128xf32>
    %cst_10 = arith.constant 0.000000e+00 : f32
    %33 = vector.broadcast %cst_10 : f32 to vector<8x128xf32>
    %34 = arith.select %25, %32, %33 : vector<8x128xi1>, vector<8x128xf32>
    %cst_11 = arith.constant dense<0.000000e+00> : vector<8xf32>
    %35 = vector.multi_reduction <add>, %34, %cst_11 [1] : vector<8x128xf32> to vector<8xf32>
    %36 = vector.shape_cast %35 : vector<8xf32> to vector<8x1xf32>
    %37 = tpu.reciprocal %36 {approx = true} : vector<8x1xf32> -> vector<8x1xf32>
    %38 = arith.mulf %36, %37 : vector<8x1xf32>
    %cst_12 = arith.constant 2.000000e+00 : f32
    %39 = vector.broadcast %cst_12 : f32 to vector<8x1xf32>
    %40 = arith.subf %39, %38 : vector<8x1xf32>
    %41 = arith.mulf %37, %40 : vector<8x1xf32>
    %42 = vector.broadcast %41 : vector<8x1xf32> to vector<8x128xf32>
    %43 = arith.mulf %34, %42 : vector<8x128xf32>
    %44 = arith.select %25, %43, %22 : vector<8x128xi1>, vector<8x128xf32>
    %c0_13 = arith.constant 0 : index
    %c0_14 = arith.constant 0 : index
    %45 = vector.load %arg3[%c0_13, %c0_14] : memref<8x128xf32, #tpu.memory_space<vmem>>, vector<8x128xf32>
    tpu.vector_store %arg3[%c0_13, %c0_14], %44 {strides = array<i32>} : memref<8x128xf32, #tpu.memory_space<vmem>>, vector<8x128xf32>,
    return
  }
  func.func @transform_0(%arg0: i32) -> (i32, i32) {
    %c0_i32 = arith.constant 0 : i32
    %c0_i32_0 = arith.constant 0 : i32
    return %arg0, %c0_i32 : i32, i32
  }
  func.func @transform_1(%arg0: i32) -> (i32, i32) {
    %c0_i32 = arith.constant 0 : i32
    %c0_i32_0 = arith.constant 0 : i32
    %c0_i32_1 = arith.constant 0 : i32
    return %c0_i32, %c0_i32_0 : i32, i32
  }
  func.func @transform_2(%arg0: i32) -> (i32, i32) {
    %c0_i32 = arith.constant 0 : i32
    %c0_i32_0 = arith.constant 0 : i32
    return %arg0, %c0_i32 : i32, i32
  }
}

</mosaic_0001>

<llo_original>
// kernel: tpu_custom_call.1
$region0: #{tpu_custom_call.1}
  #allocation0 [shape = 'u32[]', space=smem, size = 0x4, offset = 0x4, fixed_abs, tag = 'smem constant byte address 0x4 - core index']
  #allocation1 [shape = 'u32[72,128]{1,0:T(1,128)}', space=vmem, size = 0x9000, scoped, tag = 'internal scratch']
  %s0 = inlined_call_operand.hbm [shape: f32[8,32], index: 0, kind: input, shape index: {}]
  %s1 = inlined_call_operand.hbm [shape: bf16[296,128], index: 1, kind: input, shape index: {}]
  %s2 = inlined_call_operand.hbm [shape: f32[8,128], index: 2, kind: output, shape index: {}]
  %s3 = sld [smem:[#allocation0]]
  $region26: #{tpu_custom_call.1} parent=0
    _
  %s5 = ssub.s32 1, %s3
  %s6 = scalar_select 0, %s5, %s3
  $region1: #{tpu_custom_call.1} parent=0
    #allocation2 [shape = 'u8[4096]{0}', space=vmem, size = 0x1000, scoped, tag = 'input window, operand 0, single buffered']
    #allocation3 [shape = 's32[1]{0}', space=sflag, size = 0x4, scoped, tag = 'scoped memory for tpu_custom_call.1']
    #allocation4 [shape = 's32[1]{0}', space=sflag, size = 0x4, scoped, tag = 'scoped memory for tpu_custom_call.1']
    #allocation5 [shape = 'u8[75776]{0}', space=vmem, size = 0x12800, scoped, tag = 'input window, operand 1, single buffered']
    #allocation6 [shape = 's32[1]{0}', space=sflag, size = 0x4, scoped, tag = 'scoped memory for tpu_custom_call.1']
    #allocation7 [shape = 'u8[4096]{0}', space=vmem, size = 0x1000, scoped, tag = 'output window, operand 0, single buffered']
    %7 = vsyncpa [#allocation3], 0
    %8 = vsyncpa [#allocation6], 0
    %9 = vsyncpa [#allocation4], 0
    // Predicated region
    $region2: #{tpu_custom_call.1} parent=1 // pred_check
      _
    $region3: #{tpu_custom_call.1} parent=1 // pred_check_branch
      %11 = sbr.rel (0) target = $region5
    $region4: #{tpu_custom_call.1} parent=1 // pred_region
      %13 = vsyncadd [#allocation3], 0
      %s15 = sshll.u32 %s0, 4
      %s16 = int_to_ptr.hbm [resolvable:$true] %s15
      %s17 = sshll.u32 [#allocation2], 4
      %s18 = int_to_ptr.vmem [resolvable:$true] %s17
      %20 = dma.hbm_to_vmem [thread:$0]  %s16, 128, %s18, [#allocation3]
    $region5: #{tpu_custom_call.1} parent=1 // pred_fallthru
      _
    // Predicated region
    $region6: #{tpu_custom_call.1} parent=1 // pred_check
      _
    $region7: #{tpu_custom_call.1} parent=1 // pred_check_branch
      %22 = sbr.rel (0) target = $region9
    $region8: #{tpu_custom_call.1} parent=1 // pred_region
      %24 = vsyncadd [#allocation6], 0
      %s25 = sshll.u32 %s1, 4
      %s26 = int_to_ptr.hbm [resolvable:$true] %s25
      %s27 = sshll.u32 [#allocation5], 4
      %s28 = int_to_ptr.vmem [resolvable:$true] %s27
      %33 = dma.hbm_to_vmem [thread:$0]  %s26, 2368, %s28, [#allocation6], 64, 64, 4
    $region9: #{tpu_custom_call.1} parent=1 // pred_fallthru
      _
    // Predicated region
    $region10: #{tpu_custom_call.1} parent=1 // pred_check
      _
    $region11: #{tpu_custom_call.1} parent=1 // pred_check_branch
      %35 = sbr.rel (0) target = $region13
    $region12: #{tpu_custom_call.1} parent=1 // pred_region
      %37 = dma.done [#allocation3], 128
    $region13: #{tpu_custom_call.1} parent=1 // pred_fallthru
      _
    // Predicated region
    $region14: #{tpu_custom_call.1} parent=1 // pred_check
      _
    $region15: #{tpu_custom_call.1} parent=1 // pred_check_branch
      %39 = sbr.rel (0) target = $region17
    $region16: #{tpu_custom_call.1} parent=1 // pred_region
      %41 = dma.done [#allocation6], 2368
    $region17: #{tpu_custom_call.1} parent=1 // pred_fallthru
      _
    %v42 = vld [vmem:[#allocation2] sm:$0xff]
    %v43 = vld [vmem:[#allocation5] sm:$0xf]
    %v44 = vld [vmem:[#allocation5 + $0x4] sm:$0xf]
    %v45 = vld [vmem:[#allocation5 + $0x8] sm:$0xf]
    %v46 = vld [vmem:[#allocation5 + $0xc] sm:$0xf]
    %v47 = vunpack.c.l.bf16 %v43
    %v48 = vunpack.c.l.bf16 %v44
    %v49 = vunpack.c.l.bf16 %v45
    %v50 = vunpack.c.l.bf16 %v46
    %v51 = vld [vmem:[#allocation5 + $0x10] sm:$0xf]
    %v52 = vld [vmem:[#allocation5 + $0x14] sm:$0xf]
    %v53 = vld [vmem:[#allocation5 + $0x18] sm:$0xf]
    %v54 = vld [vmem:[#allocation5 + $0x1c] sm:$0xf]
    %v55 = vld [vmem:[#allocation5 + $0x20] sm:$0xf]
    %v56 = vld [vmem:[#allocation5 + $0x24] sm:$0xf]
    %v57 = vld [vmem:[#allocation5 + $0x28] sm:$0xf]
    %v58 = vld [vmem:[#allocation5 + $0x2c] sm:$0xf]
    %v59 = vld [vmem:[#allocation5 + $0x30] sm:$0xf]
    %v60 = vld [vmem:[#allocation5 + $0x34] sm:$0xf]
    %v61 = vld [vmem:[#allocation5 + $0x38] sm:$0xf]
    %v62 = vld [vmem:[#allocation5 + $0x3c] sm:$0xf]
    %v63 = vld [vmem:[#allocation5 + $0x40] sm:$0xf]
    %v64 = vld [vmem:[#allocation5 + $0x44] sm:$0xf]
    %v65 = vld [vmem:[#allocation5 + $0x48] sm:$0xf]
    %v66 = vld [vmem:[#allocation5 + $0x4c] sm:$0xf]
    %v67 = vunpack.c.l.bf16 %v51
    %v68 = vunpack.c.l.bf16 %v52
    %v69 = vunpack.c.l.bf16 %v53
    %v70 = vunpack.c.l.bf16 %v54
    %v71 = vunpack.c.l.bf16 %v55
    %v72 = vunpack.c.l.bf16 %v56
    %v73 = vunpack.c.l.bf16 %v57
    %v74 = vunpack.c.l.bf16 %v58
    %v75 = vunpack.c.l.bf16 %v59
    %v76 = vunpack.c.l.bf16 %v60
    %v77 = vunpack.c.l.bf16 %v61
    %v78 = vunpack.c.l.bf16 %v62
    %v79 = vunpack.c.l.bf16 %v63
    %v80 = vunpack.c.l.bf16 %v64
    %v81 = vunpack.c.l.bf16 %v65
    %v82 = vunpack.c.l.bf16 %v66
    %v83 = vld [vmem:[#allocation5 + $0x50] sm:$0xf]
    %v84 = vld [vmem:[#allocation5 + $0x54] sm:$0xf]
    %v85 = vld [vmem:[#allocation5 + $0x58] sm:$0xf]
    %v86 = vld [vmem:[#allocation5 + $0x5c] sm:$0xf]
    %v87 = vld [vmem:[#allocation5 + $0x60] sm:$0xf]
    %v88 = vld [vmem:[#allocation5 + $0x64] sm:$0xf]
    %v89 = vld [vmem:[#allocation5 + $0x68] sm:$0xf]
    %v90 = vld [vmem:[#allocation5 + $0x6c] sm:$0xf]
    %v91 = vld [vmem:[#allocation5 + $0x70] sm:$0xf]
    %v92 = vld [vmem:[#allocation5 + $0x74] sm:$0xf]
    %v93 = vld [vmem:[#allocation5 + $0x78] sm:$0xf]
    %v94 = vld [vmem:[#allocation5 + $0x7c] sm:$0xf]
    %v95 = vld [vmem:[#allocation5 + $0x80] sm:$0xf]
    %v96 = vld [vmem:[#allocation5 + $0x84] sm:$0xf]
    %v97 = vld [vmem:[#allocation5 + $0x88] sm:$0xf]
    %v98 = vld [vmem:[#allocation5 + $0x8c] sm:$0xf]
    %v99 = vunpack.c.l.bf16 %v83
    %v100 = vunpack.c.l.bf16 %v84
    %v101 = vunpack.c.l.bf16 %v85
    %v102 = vunpack.c.l.bf16 %v86
    %v103 = vunpack.c.l.bf16 %v87
    %v104 = vunpack.c.l.bf16 %v88
    %v105 = vunpack.c.l.bf16 %v89
    %v106 = vunpack.c.l.bf16 %v90
    %v107 = vunpack.c.l.bf16 %v91
    %v108 = vunpack.c.l.bf16 %v92
    %v109 = vunpack.c.l.bf16 %v93
    %v110 = vunpack.c.l.bf16 %v94
    %v111 = vunpack.c.l.bf16 %v95
    %v112 = vunpack.c.l.bf16 %v96
    %v113 = vunpack.c.l.bf16 %v97
    %v114 = vunpack.c.l.bf16 %v98
    %v115 = vld [vmem:[#allocation5 + $0x90] sm:$0xf]
    %v116 = vunpack.c.l.bf16 %v115
    %v117 = vperm.slane %v116, 0
    %vm118 = vcmask 261120
    %v120 = vsel %vm118, %v42, 0
    %122 = vmatpush.msra.mxu0 0.0
    %123 = vmatpush.msra.mxu0 0.0
    %124 = vmatpush.msra.mxu0 0.0
    %125 = vmatpush.msra.mxu0 0.0
    %126 = vmatpush.msra.mxu0 0.0
    %127 = vmatpush.msra.mxu0 0.0
    %128 = vmatpush.msra.mxu0 0.0
    %129 = vmatpush.msra.mxu0 0.0
    %130 = vmatpush.msra.mxu0 0.0
    %131 = vmatpush.msra.mxu0 0.0
    %132 = vmatpush.msra.mxu0 0.0
    %133 = vmatpush.msra.mxu0 0.0
    %134 = vmatpush.msra.mxu0 %v50
    %135 = vmatpush.msra.mxu0 %v49
    %136 = vmatpush.msra.mxu0 %v48
    %137 = vmatpush.msra.mxu0 %v47
    %138 = vmatmul.f32.gmra.mxu0 %v120
    %v139 = vpop.f32.mrf.mxu0
    %v140 = vadd.f32 %v117, %v139
    %141 = vdwg.mxu0
    %v142 = vtanh.pop %v140
    %v143 = vperm.slane %v116, 1
    %144 = vmatpush.msra.mxu0 %v82
    %145 = vmatpush.msra.mxu0 %v81
    %146 = vmatpush.msra.mxu0 %v80
    %147 = vmatpush.msra.mxu0 %v79
    %148 = vmatpush.msra.mxu0 %v78
    %149 = vmatpush.msra.mxu0 %v77
    %150 = vmatpush.msra.mxu0 %v76
    %151 = vmatpush.msra.mxu0 %v75
    %152 = vmatpush.msra.mxu0 %v74
    %153 = vmatpush.msra.mxu0 %v73
    %154 = vmatpush.msra.mxu0 %v72
    %155 = vmatpush.msra.mxu0 %v71
    %156 = vmatpush.msra.mxu0 %v70
    %157 = vmatpush.msra.mxu0 %v69
    %158 = vmatpush.msra.mxu0 %v68
    %159 = vmatpush.msra.mxu0 %v67
    %160 = vmatmul.f32.gmra.mxu0 %v142
    %v161 = vpop.f32.mrf.mxu0
    %v162 = vadd.f32 %v143, %v161
    %163 = vdwg.mxu0
    %v164 = vtanh.pop %v162
    %v165 = vperm.slane %v116, 2
    %166 = vmatpush.msra.mxu0 %v114
    %167 = vmatpush.msra.mxu0 %v113
    %168 = vmatpush.msra.mxu0 %v112
    %169 = vmatpush.msra.mxu0 %v111
    %170 = vmatpush.msra.mxu0 %v110
    %171 = vmatpush.msra.mxu0 %v109
    %172 = vmatpush.msra.mxu0 %v108
    %173 = vmatpush.msra.mxu0 %v107
    %174 = vmatpush.msra.mxu0 %v106
    %175 = vmatpush.msra.mxu0 %v105
    %176 = vmatpush.msra.mxu0 %v104
    %177 = vmatpush.msra.mxu0 %v103
    %178 = vmatpush.msra.mxu0 %v102
    %179 = vmatpush.msra.mxu0 %v101
    %180 = vmatpush.msra.mxu0 %v100
    %181 = vmatpush.msra.mxu0 %v99
    %182 = vmatmul.f32.gmra.mxu0 %v164
    %v183 = vpop.f32.mrf.mxu0
    %v184 = vadd.f32 %v165, %v183
    %185 = vdwg.mxu0
    %v186 = vlaneseq
    %v187 = vand.u32 %v186, 127
    %vm188 = vcmp.lt.s32.totalorder %v187, 6
    %v189 = vsel %vm188, %v184, -1e+30
    %190 = vmax.xlane.f32.xlu0 %v189
    %v191 = vpop.xlane.xlu0 %190
    %v192 = vsub.f32 %v189, %v191
    %v193 = vmul.f32 %v192, 1.442695
    %v194 = vpow.pop %v193
    %v195 = vsel %vm188, %v194, 0.0
    %196 = vadd.xlane.f32.xlu0 %v195
    %v197 = vpop.xlane.xlu0 %196
    %v198 = vrcp.pop %v197
    %v199 = vmul.f32 %v197, %v198
    %v200 = vsub.f32 2.0, %v199
    %v201 = vmul.f32 %v198, %v200
    %v202 = vmul.f32 %v195, %v201
    %v203 = vsel %vm188, %v202, %v184
    %204 = vst [vmem:[#allocation7] sm:$0xff] %v203
    // Predicated region
    $region18: #{tpu_custom_call.1} parent=1 // pred_check
      _
    $region19: #{tpu_custom_call.1} parent=1 // pred_check_branch
      %206 = sbr.rel (0) target = $region21
    $region20: #{tpu_custom_call.1} parent=1 // pred_region
      %208 = vsyncadd [#allocation4], 0
      %s210 = sshll.u32 [#allocation7], 4
      %s211 = int_to_ptr.vmem [resolvable:$true] %s210
      %s212 = sshll.u32 %s2, 4
      %s213 = int_to_ptr.hbm [resolvable:$true] %s212
      %215 = dma.vmem_to_hbm [thread:$0]  %s211, 128, %s213, [#allocation4]
    $region21: #{tpu_custom_call.1} parent=1 // pred_fallthru
      _
    // Predicated region
    $region22: #{tpu_custom_call.1} parent=1 // pred_check
      _
    $region23: #{tpu_custom_call.1} parent=1 // pred_check_branch
      %217 = sbr.rel (0) target = $region25
    $region24: #{tpu_custom_call.1} parent=1 // pred_region
      %219 = dma.done [#allocation4], 128
    $region25: #{tpu_custom_call.1} parent=1 // pred_fallthru
      _
    %220 = vsyncpa [#allocation3], 1
    %221 = vsyncpa [#allocation6], 1
    %222 = vsyncpa [#allocation4], 1

</llo_original>
